<compile_context>
chip_gen: v7x
topology: tpu7x:2x2x1
jax: 0.10.0
libtpu: 0.0.40
codegen_flags: <defaults>
</compile_context>

<pallas_src>
import functools
import math

import jax
import jax.numpy as jnp
from jax import lax
from jax.experimental import pallas as pl
from jax.experimental.pallas import tpu as pltpu


# ---------------------------------------------------------------------------
# Kernels
# ---------------------------------------------------------------------------
def _scale_norm_kernel_plain(g_ref, x_ref, o_ref, *, eps):
    """dim >= 128 (or non-divisor of 128): plain per-row lane reduction."""
    x = x_ref[...].astype(jnp.float32)
    sumsq = jnp.sum(x * x, axis=-1, keepdims=True)                  # (br, 1)
    # clamp(||x||, eps) == sqrt(max(sum(x^2), eps^2)); single EUP rsqrt.
    inv = lax.rsqrt(jnp.maximum(sumsq, eps * eps))
    o_ref[...] = (x * inv + g_ref[0]).astype(o_ref.dtype)


def _scale_norm_kernel_packed(g_ref, x_ref, comp_ref, exp_ref, o_ref, *, eps):
    """dim | 128: each 128-lane physical row packs k = 128//dim logical rows.

    comp_ref : (128, kp) exact 0/1 compressor  -> per-segment sum of squares
    exp_ref  : (kp, 128) exact 0/1 expander    -> broadcast rsqrt back to lanes
    Both hoisted to the wrapper (built once, tiny, resident in VMEM).
    """
    x = x_ref[...].astype(jnp.float32)
    xsq = x * x
    seg_sum = jnp.dot(xsq, comp_ref[...],
                      preferred_element_type=jnp.float32,
                      precision=lax.Precision.HIGHEST)              # (br, kp)
    inv_seg = lax.rsqrt(jnp.maximum(seg_sum, eps * eps))            # (br, kp)
    inv = jnp.dot(inv_seg, exp_ref[...],
                  preferred_element_type=jnp.float32,
                  precision=lax.Precision.HIGHEST)                  # (br, 128)
    o_ref[...] = (x * inv + g_ref[0]).astype(o_ref.dtype)


# ---------------------------------------------------------------------------
# Wrapper helpers
# ---------------------------------------------------------------------------
def _tpu_vmem_capacity_bytes():
    """Best-effort VMEM capacity query; conservative 64 MiB fallback."""
    try:
        info = pltpu.get_tpu_info()
        cap = getattr(info, "vmem_capacity_bytes", None)
        if cap:
            return int(cap)
    except Exception:
        pass
    return 64 << 20


def _pick_block_rows(rows, lane_dim, itemsize, target_f32_bytes, min_steps):
    """VMEM-budgeted row tile, multiple of the sublane pack, >= min_steps steps."""
    sublane = {4: 8, 2: 16, 1: 32}.get(itemsize, 8)
    br = max((target_f32_bytes // (lane_dim * 4)) // sublane * sublane, sublane)
    # Keep at least min_steps grid steps (pipeline overlap; 2 per TC on 2-TC chips)
    # whenever the row count allows it.
    if rows > min_steps * sublane:
        br = min(br, max((rows // min_steps) // sublane * sublane, sublane))
    br = max(min(br, rows), 1)
    # Prefer a tile that divides rows only when the grid would be short anyway;
    # with a long grid, one ragged tail block is cheaper than smaller tiles
    # everywhere.  Never shrink by more than 2x.
    n_steps = -(-rows // br)
    if rows % br and n_steps < 8 and br > sublane:
        for cand in range(br, br // 2, -sublane):
            if rows % cand == 0:
                br = cand
                break
    return br


# ---------------------------------------------------------------------------
# Public entry point
# ---------------------------------------------------------------------------
def scale_norm(x: jax.Array, g: jax.Array, eps: float = 1e-5) -> jax.Array:
    """ScaleNorm over the last axis of x. g is the (1,)-shaped scalar gain."""
    orig_shape = x.shape
    dim = orig_shape[-1]
    rows = math.prod(orig_shape[:-1]) if len(orig_shape) > 1 else 1
    if rows == 0 or dim == 0:
        return x
    itemsize = jnp.dtype(x.dtype).itemsize

    # Generation-aware budgets.
    vmem_capacity = _tpu_vmem_capacity_bytes()
    big_vmem = vmem_capacity >= (100 << 20)          # v5e / v6e (128 MiB)
    target_f32_bytes = (6 << 20) if big_vmem else (2 << 20)
    vmem_limit_cap = (96 << 20) if big_vmem else (40 << 20)
    min_steps = 2 if big_vmem else 4                 # >=2 steps per TC on v7x

    x2d = x.reshape(rows, dim)

    # Lane-dense packing: unconditional when dim divides 128 (pad rows, slice out).
    packed = dim < 128 and (128 % dim == 0)
    pad = 0
    if packed:
        k = 128 // dim
        pad = (-rows) % k
        if pad:
            x2d = jnp.pad(x2d, ((0, pad), (0, 0)))   # zero rows -> norm 0 -> clamp(eps)
        packed_rows = (rows + pad) // k
        lane_dim = 128
        x2d = x2d.reshape(packed_rows, lane_dim)
        kp = max(k, 8)                               # pad segment count to >=8 (power of 2)
        seg_id = jnp.arange(128, dtype=jnp.int32) // dim
        comp = (seg_id[:, None] == jnp.arange(kp, dtype=jnp.int32)[None, :]
                ).astype(jnp.float32)                # (128, kp) exact 0/1
        expd = comp.T                                # (kp, 128) exact 0/1
    else:
        packed_rows = rows
        lane_dim = dim

    block_rows = _pick_block_rows(packed_rows, lane_dim, itemsize,
                                  target_f32_bytes, min_steps)
    grid = (pl.cdiv(packed_rows, block_rows),)

    # Double-buffered in/out tiles + f32 temporaries + headroom.
    tile_in = block_rows * lane_dim * itemsize
    tile_f32 = block_rows * lane_dim * 4
    vmem_need = 4 * tile_in + 4 * tile_f32 + (8 << 20)
    if vmem_need > vmem_limit_cap:
        # TODO(synk): for extremely wide last dims, split into a two-pass
        # (reduce-then-scale) kernel along dim instead of failing.
        raise ValueError(
            f"ScaleNorm: a single-row tile (dim={dim}, {tile_in} B) exceeds the "
            f"{vmem_limit_cap >> 20} MiB VMEM budget for this TPU generation.")
    vmem_limit = int(min(max(vmem_need, 16 << 20), vmem_limit_cap))

    cost = pl.CostEstimate(
        flops=int(4 * packed_rows * lane_dim),
        transcendentals=int(rows),
        bytes_accessed=int(2 * packed_rows * lane_dim * itemsize),
    )

    if packed:
        kernel = functools.partial(_scale_norm_kernel_packed, eps=eps)
        in_specs = [
            pl.BlockSpec(memory_space=pltpu.MemorySpace.SMEM),           # g (1,)
            pl.BlockSpec((block_rows, lane_dim), lambda i: (i, 0)),      # x tile
            pl.BlockSpec((128, kp), lambda i: (0, 0)),                   # compressor
            pl.BlockSpec((kp, 128), lambda i: (0, 0)),                   # expander
        ]
        args = (g, x2d, comp, expd)
    else:
        kernel = functools.partial(_scale_norm_kernel_plain, eps=eps)
        in_specs = [
            pl.BlockSpec(memory_space=pltpu.MemorySpace.SMEM),           # g (1,)
            pl.BlockSpec((block_rows, lane_dim), lambda i: (i, 0)),      # x tile
        ]
        args = (g, x2d)

    out2d = pl.pallas_call(
        kernel,
        out_shape=jax.ShapeDtypeStruct((packed_rows, lane_dim), x.dtype),
        grid=grid,
        in_specs=in_specs,
        out_specs=pl.BlockSpec((block_rows, lane_dim), lambda i: (i, 0)),
        compiler_params=pltpu.CompilerParams(
            dimension_semantics=("parallel",),
            vmem_limit_bytes=vmem_limit,
        ),
        cost_estimate=cost,
    )(*args)

    if packed:
        out = out2d.reshape(rows + pad, dim)[:rows]
    else:
        out = out2d
    return out.reshape(orig_shape)


# ---------------------------------------------------------------------------
# Self-test
# ---------------------------------------------------------------------------
if __name__ == "__main__":
    eps = 1e-5
    key = jax.random.PRNGKey(0)
    k1, k2, k3 = jax.random.split(key, 3)

    def ref_fn(x, g):
        xf = x.astype(jnp.float32)
        norm = jnp.linalg.norm(xf, axis=-1, keepdims=True)
        return (xf / jnp.maximum(norm, eps) + g.astype(jnp.float32)).astype(x.dtype)

    # 1) Small dim (32 -> lane-packed, 4 logical rows per 128-lane physical row),
    #    row count divisible by k.
    x1 = jax.random.normal(k1, (2, 16, 32), dtype=jnp.float32)
    g1 = jnp.ones((1,), dtype=jnp.float32) * (32 ** -0.5)
    o1 = jax.block_until_ready(scale_norm(x1, g1, eps=eps))
    assert o1.shape == x1.shape
    err1 = float(jnp.max(jnp.abs(o1 - ref_fn(x1, g1))))
    assert jnp.allclose(o1, ref_fn(x1, g1), atol=1e-5, rtol=1e-5), err1

    # 2) Small dim with ragged row count (rows % k != 0 -> zero-pad + slice path).
    x2 = jax.random.normal(k2, (2, 7, 32), dtype=jnp.float32)
    o2 = jax.block_until_ready(scale_norm(x2, g1, eps=eps))
    assert o2.shape == x2.shape
    err2 = float(jnp.max(jnp.abs(o2 - ref_fn(x2, g1))))
    assert jnp.allclose(o2, ref_fn(x2, g1), atol=1e-5, rtol=1e-5), err2

    # 3) Wide dim (multiple of 128 -> plain lane-reduction path).
    x3 = jax.random.normal(k3, (2, 16, 256), dtype=jnp.float32)
    g3 = jnp.ones((1,), dtype=jnp.float32) * (256 ** -0.5)
    o3 = jax.block_until_ready(scale_norm(x3, g3, eps=eps))
    assert o3.shape == x3.shape
    err3 = float(jnp.max(jnp.abs(o3 - ref_fn(x3, g3))))
    assert jnp.allclose(o3, ref_fn(x3, g3), atol=1e-5, rtol=1e-5), err3

    print("KERNEL_OK")
</pallas_src>

<mosaic_0001>
module attributes {stable_mosaic.version = 11 : i64} {
  func.func @_scale_norm_kernel_packed(%arg0: i32, %arg1: memref<1xf32, #tpu.memory_space<smem>>, %arg2: memref<8x128xf32, #tpu.memory_space<vmem>>, %arg3: memref<128x8xf32, #tpu.memory_space<vmem>>, %arg4: memref<8x128xf32, #tpu.memory_space<vmem>>, %arg5: memref<8x128xf32, #tpu.memory_space<vmem>>) attributes {dimension_semantics = [#tpu.dimension_semantics<parallel>], iteration_bounds = array<i64: 1>, scalar_prefetch = 0 : i64, scratch_operands = 0 : i64, tpu.core_type = #tpu.core_type<tc>, window_params = [{transform_indices = @transform_0, window_bounds = array<i64: 1>}, {transform_indices = @transform_1, window_bounds = array<i64: 8, 128>}, {pipeline_mode = #tpu.pipeline_mode<synchronous>, transform_indices = @transform_2, window_bounds = array<i64: 128, 8>}, {pipeline_mode = #tpu.pipeline_mode<synchronous>, transform_indices = @transform_3, window_bounds = array<i64: 8, 128>}, {transform_indices = @transform_4, window_bounds = array<i64: 8, 128>}]} {
    %c0 = arith.constant 0 : index
    %c0_0 = arith.constant 0 : index
    %0 = vector.load %arg2[%c0, %c0_0] : memref<8x128xf32, #tpu.memory_space<vmem>>, vector<8x128xf32>
    %1 = arith.mulf %0, %0 : vector<8x128xf32>
    %c0_1 = arith.constant 0 : index
    %c0_2 = arith.constant 0 : index
    %2 = vector.load %arg3[%c0_1, %c0_2] : memref<128x8xf32, #tpu.memory_space<vmem>>, vector<128x8xf32>
    %cst = arith.constant dense<0.000000e+00> : vector<8x8xf32>
    %3 = tpu.matmul %1, %2, %cst {dimension_numbers = #tpu.dot_dimension_numbers<[1], [0], [0], [1], [0, 0, 1, 1], [], []>, precision = #tpu.contract_precision<fp32>} : vector<8x128xf32>, vector<128x8xf32>, vector<8x8xf32> -> vector<8x8xf32>
    %cst_3 = arith.constant 1.000000e-10 : f32
    %4 = vector.broadcast %cst_3 : f32 to vector<8x8xf32>
    %5 = arith.maximumf %3, %4 : vector<8x8xf32>
    %6 = math.rsqrt %5 : vector<8x8xf32>
    %c0_4 = arith.constant 0 : index
    %c0_5 = arith.constant 0 : index
    %7 = vector.load %arg4[%c0_4, %c0_5] : memref<8x128xf32, #tpu.memory_space<vmem>>, vector<8x128xf32>
    %cst_6 = arith.constant dense<0.000000e+00> : vector<8x128xf32>
    %8 = tpu.matmul %6, %7, %cst_6 {dimension_numbers = #tpu.dot_dimension_numbers<[1], [0], [0], [1], [0, 0, 1, 1], [], []>, precision = #tpu.contract_precision<fp32>} : vector<8x8xf32>, vector<8x128xf32>, vector<8x128xf32> -> vector<8x128xf32>
    %9 = arith.mulf %0, %8 : vector<8x128xf32>
    %c0_7 = arith.constant 0 : index
    %10 = memref.load %arg1[%c0_7] : memref<1xf32, #tpu.memory_space<smem>>
    %11 = vector.broadcast %10 : f32 to vector<8x128xf32>
    %12 = arith.addf %9, %11 : vector<8x128xf32>
    %c0_8 = arith.constant 0 : index
    %c0_9 = arith.constant 0 : index
    %13 = vector.load %arg5[%c0_8, %c0_9] : memref<8x128xf32, #tpu.memory_space<vmem>>, vector<8x128xf32>
    tpu.vector_store %arg5[%c0_8, %c0_9], %12 {strides = array<i32>} : memref<8x128xf32, #tpu.memory_space<vmem>>, vector<8x128xf32>,
    return
  }
  func.func @transform_0(%arg0: i32) -> i32 {
    %c0_i32 = arith.constant 0 : i32
    %c0_i32_0 = arith.constant 0 : i32
    return %c0_i32 : i32
  }
  func.func @transform_1(%arg0: i32) -> (i32, i32) {
    %c0_i32 = arith.constant 0 : i32
    %c0_i32_0 = arith.constant 0 : i32
    return %arg0, %c0_i32 : i32, i32
  }
  func.func @transform_2(%arg0: i32) -> (i32, i32) {
    %c0_i32 = arith.constant 0 : i32
    %c0_i32_0 = arith.constant 0 : i32
    %c0_i32_1 = arith.constant 0 : i32
    return %c0_i32, %c0_i32_0 : i32, i32
  }
  func.func @transform_3(%arg0: i32) -> (i32, i32) {
    %c0_i32 = arith.constant 0 : i32
    %c0_i32_0 = arith.constant 0 : i32
    %c0_i32_1 = arith.constant 0 : i32
    return %c0_i32, %c0_i32_0 : i32, i32
  }
  func.func @transform_4(%arg0: i32) -> (i32, i32) {
    %c0_i32 = arith.constant 0 : i32
    %c0_i32_0 = arith.constant 0 : i32
    return %arg0, %c0_i32 : i32, i32
  }
}

</mosaic_0001>

<llo_original>
// kernel: tpu_custom_call.1
$region0: #{tpu_custom_call.1}
  #allocation0 [shape = 'u32[]', space=smem, size = 0x4, offset = 0x4, fixed_abs, tag = 'smem constant byte address 0x4 - core index']
  #allocation1 [shape = 'u32[144,128]{1,0:T(1,128)}', space=vmem, size = 0x12000, scoped, tag = 'internal scratch']
  #allocation2 [shape = 'f32[1]{0:T(128)S(6)}', space=smem, size = 0x200, scoped, tag = 'scoped memory for tpu_custom_call.1']
  %s0 = inlined_call_operand.<no memory space> [shape: f32[1], index: 0, kind: input, shape index: {}]
  %s1 = inlined_call_operand.vmem [shape: f32[8,128], index: 1, kind: input, shape index: {}]
  %s2 = inlined_call_operand.vmem [shape: f32[128,8], index: 2, kind: input, shape index: {}]
  %s3 = inlined_call_operand.vmem [shape: f32[8,128], index: 3, kind: input, shape index: {}]
  %s4 = inlined_call_operand.hbm [shape: f32[8,128], index: 4, kind: output, shape index: {}]
  %s5 = sld [smem:[#allocation0]]
  $region26: #{tpu_custom_call.1} parent=0
    _
  %s7 = ssub.s32 1, %s5
  %s8 = scalar_select 0, %s7, %s5
  %9 = sst [smem:[#allocation2]] %s0
  $region1: #{tpu_custom_call.1} parent=0
    #allocation3 [shape = 'u8[4096]{0}', space=vmem, size = 0x1000, scoped, tag = 'output window, operand 0, single buffered']
    #allocation4 [shape = 's32[1]{0}', space=sflag, size = 0x4, scoped, tag = 'scoped memory for tpu_custom_call.1']
    %10 = vsyncpa [#allocation4], 0
    // Predicated region
    $region2: #{tpu_custom_call.1} parent=1 // pred_check
      _
    $region3: #{tpu_custom_call.1} parent=1 // pred_check_branch
      %12 = sbr.rel (0) target = $region5
    $region4: #{tpu_custom_call.1} parent=1 // pred_region
      _
    $region5: #{tpu_custom_call.1} parent=1 // pred_fallthru
      _
    // Predicated region
    $region6: #{tpu_custom_call.1} parent=1 // pred_check
      _
    $region7: #{tpu_custom_call.1} parent=1 // pred_check_branch
      %14 = sbr.rel (0) target = $region9
    $region8: #{tpu_custom_call.1} parent=1 // pred_region
      _
    $region9: #{tpu_custom_call.1} parent=1 // pred_fallthru
      _
    // Predicated region
    $region10: #{tpu_custom_call.1} parent=1 // pred_check
      _
    $region11: #{tpu_custom_call.1} parent=1 // pred_check_branch
      %16 = sbr.rel (0) target = $region13
    $region12: #{tpu_custom_call.1} parent=1 // pred_region
      _
    $region13: #{tpu_custom_call.1} parent=1 // pred_fallthru
      _
    // Predicated region
    $region14: #{tpu_custom_call.1} parent=1 // pred_check
      _
    $region15: #{tpu_custom_call.1} parent=1 // pred_check_branch
      %18 = sbr.rel (0) target = $region17
    $region16: #{tpu_custom_call.1} parent=1 // pred_region
      _
    $region17: #{tpu_custom_call.1} parent=1 // pred_fallthru
      _
    %v19 = vld [vmem:[%s1] sm:$0xff]
    %v20 = vmul.f32 %v19, %v19
    %v21 = vld [vmem:[%s2] sm:$0xff]
    %v22 = vld [vmem:[%s2 + $0x8] sm:$0xff]
    %v23 = vld [vmem:[%s2 + $0x10] sm:$0xff]
    %v24 = vld [vmem:[%s2 + $0x18] sm:$0xff]
    %v25 = vld [vmem:[%s2 + $0x20] sm:$0xff]
    %v26 = vld [vmem:[%s2 + $0x28] sm:$0xff]
    %v27 = vld [vmem:[%s2 + $0x30] sm:$0xff]
    %v28 = vld [vmem:[%s2 + $0x38] sm:$0xff]
    %v29 = vld [vmem:[%s2 + $0x40] sm:$0xff]
    %v30 = vld [vmem:[%s2 + $0x48] sm:$0xff]
    %v31 = vld [vmem:[%s2 + $0x50] sm:$0xff]
    %v32 = vld [vmem:[%s2 + $0x58] sm:$0xff]
    %v33 = vld [vmem:[%s2 + $0x60] sm:$0xff]
    %v34 = vld [vmem:[%s2 + $0x68] sm:$0xff]
    %v35 = vld [vmem:[%s2 + $0x70] sm:$0xff]
    %v36 = vld [vmem:[%s2 + $0x78] sm:$0xff]
    %37 = vmatprep.subr.mxu0 0.0
    %v38 = vand.u32 %v21, 4294901760
    %39 = vmatpush1.msra.mxu0 %v38
    %40 = vmatprep.subr.mxu0 0.0
    %v41 = vand.u32 %v22, 4294901760
    %42 = vmatpush1.msra.mxu0 %v41
    %43 = vmatprep.subr.mxu0 0.0
    %v44 = vand.u32 %v23, 4294901760
    %45 = vmatpush1.msra.mxu0 %v44
    %46 = vmatprep.subr.mxu0 0.0
    %v47 = vand.u32 %v24, 4294901760
    %48 = vmatpush1.msra.mxu0 %v47
    %49 = vmatprep.subr.mxu0 0.0
    %v50 = vand.u32 %v25, 4294901760
    %51 = vmatpush1.msra.mxu0 %v50
    %52 = vmatprep.subr.mxu0 0.0
    %v53 = vand.u32 %v26, 4294901760
    %54 = vmatpush1.msra.mxu0 %v53
    %55 = vmatprep.subr.mxu0 0.0
    %v56 = vand.u32 %v27, 4294901760
    %57 = vmatpush1.msra.mxu0 %v56
    %58 = vmatprep.subr.mxu0 0.0
    %v59 = vand.u32 %v28, 4294901760
    %60 = vmatpush1.msra.mxu0 %v59
    %61 = vmatprep.subr.mxu0 0.0
    %v62 = vand.u32 %v29, 4294901760
    %63 = vmatpush1.msra.mxu0 %v62
    %64 = vmatprep.subr.mxu0 0.0
    %v65 = vand.u32 %v30, 4294901760
    %66 = vmatpush1.msra.mxu0 %v65
    %67 = vmatprep.subr.mxu0 0.0
    %v68 = vand.u32 %v31, 4294901760
    %69 = vmatpush1.msra.mxu0 %v68
    %70 = vmatprep.subr.mxu0 0.0
    %v71 = vand.u32 %v32, 4294901760
    %72 = vmatpush1.msra.mxu0 %v71
    %73 = vmatprep.subr.mxu0 0.0
    %v74 = vand.u32 %v33, 4294901760
    %75 = vmatpush1.msra.mxu0 %v74
    %76 = vmatprep.subr.mxu0 0.0
    %v77 = vand.u32 %v34, 4294901760
    %78 = vmatpush1.msra.mxu0 %v77
    %79 = vmatprep.subr.mxu0 0.0
    %v80 = vand.u32 %v35, 4294901760
    %81 = vmatpush1.msra.mxu0 %v80
    %82 = vmatprep.subr.mxu0 0.0
    %v83 = vand.u32 %v36, 4294901760
    %84 = vmatpush1.msra.mxu0 %v83
    %85 = vmatprep.subr.mxu0 0.0
    %86 = vmatpush1.msra.mxu0 0.0
    %87 = vmatprep.subr.mxu0 0.0
    %88 = vmatpush1.msra.mxu0 0.0
    %89 = vmatprep.subr.mxu0 0.0
    %90 = vmatpush1.msra.mxu0 0.0
    %91 = vmatprep.subr.mxu0 0.0
    %92 = vmatpush1.msra.mxu0 0.0
    %93 = vmatprep.subr.mxu0 0.0
    %94 = vmatpush1.msra.mxu0 0.0
    %95 = vmatprep.subr.mxu0 0.0
    %96 = vmatpush1.msra.mxu0 0.0
    %97 = vmatprep.subr.mxu0 0.0
    %98 = vmatpush1.msra.mxu0 0.0
    %99 = vmatprep.subr.mxu0 0.0
    %100 = vmatpush1.msra.mxu0 0.0
    %101 = vmatprep.subr.mxu0 0.0
    %102 = vmatpush1.msra.mxu0 0.0
    %103 = vmatprep.subr.mxu0 0.0
    %104 = vmatpush1.msra.mxu0 0.0
    %105 = vmatprep.subr.mxu0 0.0
    %106 = vmatpush1.msra.mxu0 0.0
    %107 = vmatprep.subr.mxu0 0.0
    %108 = vmatpush1.msra.mxu0 0.0
    %109 = vmatprep.subr.mxu0 0.0
    %110 = vmatpush1.msra.mxu0 0.0
    %111 = vmatprep.subr.mxu0 0.0
    %112 = vmatpush1.msra.mxu0 0.0
    %113 = vmatprep.subr.mxu0 0.0
    %114 = vmatpush1.msra.mxu0 0.0
    %115 = vmatprep.subr.mxu0 0.0
    %116 = vmatpush1.msra.mxu0 0.0
    %117 = vmatprep.mubr.f32.mxu0 0.0
    %v118 = vand.u32 %v20, 4294901760
    %v119 = vsub.f32 %v20, %v118
    %v120 = vand.u32 %v119, 4294901760
    %v121 = vsub.f32 %v119, %v120
    %v122 = vand.u32 %v121, 4294901760
    %123 = vmatmul.mubr.f32.gmra.mrb[0].mxu0 %v122
    %v124 = vpop.f32.mrb[0].mxu0
    %v125 = vadd.f32 0.0, %v124
    %v126 = vpop.f32.mrb[0].mxu0
    %127 = vdwg.mxu0
    %128 = vmatprep.subr.mxu0 0.0
    %v129 = vand.u32 %v21, 4294901760
    %v130 = vsub.f32 %v21, %v129
    %v131 = vand.u32 %v130, 4294901760
    %v132 = vsub.f32 %v130, %v131
    %v133 = vand.u32 %v132, 4294901760
    %134 = vmatpush1.msra.mxu0 %v133
    %135 = vmatprep.subr.mxu0 0.0
    %v136 = vand.u32 %v22, 4294901760
    %v137 = vsub.f32 %v22, %v136
    %v138 = vand.u32 %v137, 4294901760
    %v139 = vsub.f32 %v137, %v138
    %v140 = vand.u32 %v139, 4294901760
    %141 = vmatpush1.msra.mxu0 %v140
    %142 = vmatprep.subr.mxu0 0.0
    %v143 = vand.u32 %v23, 4294901760
    %v144 = vsub.f32 %v23, %v143
    %v145 = vand.u32 %v144, 4294901760
    %v146 = vsub.f32 %v144, %v145
    %v147 = vand.u32 %v146, 4294901760
    %148 = vmatpush1.msra.mxu0 %v147
    %149 = vmatprep.subr.mxu0 0.0
    %v150 = vand.u32 %v24, 4294901760
    %v151 = vsub.f32 %v24, %v150
    %v152 = vand.u32 %v151, 4294901760
    %v153 = vsub.f32 %v151, %v152
    %v154 = vand.u32 %v153, 4294901760
    %155 = vmatpush1.msra.mxu0 %v154
    %156 = vmatprep.subr.mxu0 0.0
    %v157 = vand.u32 %v25, 4294901760
    %v158 = vsub.f32 %v25, %v157
    %v159 = vand.u32 %v158, 4294901760
    %v160 = vsub.f32 %v158, %v159
    %v161 = vand.u32 %v160, 4294901760
    %162 = vmatpush1.msra.mxu0 %v161
    %163 = vmatprep.subr.mxu0 0.0
    %v164 = vand.u32 %v26, 4294901760
    %v165 = vsub.f32 %v26, %v164
    %v166 = vand.u32 %v165, 4294901760
    %v167 = vsub.f32 %v165, %v166
    %v168 = vand.u32 %v167, 4294901760
    %169 = vmatpush1.msra.mxu0 %v168
    %170 = vmatprep.subr.mxu0 0.0
    %v171 = vand.u32 %v27, 4294901760
    %v172 = vsub.f32 %v27, %v171
    %v173 = vand.u32 %v172, 4294901760
    %v174 = vsub.f32 %v172, %v173
    %v175 = vand.u32 %v174, 4294901760
    %176 = vmatpush1.msra.mxu0 %v175
    %177 = vmatprep.subr.mxu0 0.0
    %v178 = vand.u32 %v28, 4294901760
    %v179 = vsub.f32 %v28, %v178
    %v180 = vand.u32 %v179, 4294901760
    %v181 = vsub.f32 %v179, %v180
    %v182 = vand.u32 %v181, 4294901760
    %183 = vmatpush1.msra.mxu0 %v182
    %184 = vmatprep.subr.mxu0 0.0
    %v185 = vand.u32 %v29, 4294901760
    %v186 = vsub.f32 %v29, %v185
    %v187 = vand.u32 %v186, 4294901760
    %v188 = vsub.f32 %v186, %v187
    %v189 = vand.u32 %v188, 4294901760
    %190 = vmatpush1.msra.mxu0 %v189
    %191 = vmatprep.subr.mxu0 0.0
    %v192 = vand.u32 %v30, 4294901760
    %v193 = vsub.f32 %v30, %v192
    %v194 = vand.u32 %v193, 4294901760
    %v195 = vsub.f32 %v193, %v194
    %v196 = vand.u32 %v195, 4294901760
    %197 = vmatpush1.msra.mxu0 %v196
    %198 = vmatprep.subr.mxu0 0.0
    %v199 = vand.u32 %v31, 4294901760
    %v200 = vsub.f32 %v31, %v199
    %v201 = vand.u32 %v200, 4294901760
    %v202 = vsub.f32 %v200, %v201
    %v203 = vand.u32 %v202, 4294901760
    %204 = vmatpush1.msra.mxu0 %v203
    %205 = vmatprep.subr.mxu0 0.0
    %v206 = vand.u32 %v32, 4294901760
    %v207 = vsub.f32 %v32, %v206
    %v208 = vand.u32 %v207, 4294901760
    %v209 = vsub.f32 %v207, %v208
    %v210 = vand.u32 %v209, 4294901760
    %211 = vmatpush1.msra.mxu0 %v210
    %212 = vmatprep.subr.mxu0 0.0
    %v213 = vand.u32 %v33, 4294901760
    %v214 = vsub.f32 %v33, %v213
    %v215 = vand.u32 %v214, 4294901760
    %v216 = vsub.f32 %v214, %v215
    %v217 = vand.u32 %v216, 4294901760
    %218 = vmatpush1.msra.mxu0 %v217
    %219 = vmatprep.subr.mxu0 0.0
    %v220 = vand.u32 %v34, 4294901760
    %v221 = vsub.f32 %v34, %v220
    %v222 = vand.u32 %v221, 4294901760
    %v223 = vsub.f32 %v221, %v222
    %v224 = vand.u32 %v223, 4294901760
    %225 = vmatpush1.msra.mxu0 %v224
    %226 = vmatprep.subr.mxu0 0.0
    %v227 = vand.u32 %v35, 4294901760
    %v228 = vsub.f32 %v35, %v227
    %v229 = vand.u32 %v228, 4294901760
    %v230 = vsub.f32 %v228, %v229
    %v231 = vand.u32 %v230, 4294901760
    %232 = vmatpush1.msra.mxu0 %v231
    %233 = vmatprep.subr.mxu0 0.0
    %v234 = vand.u32 %v36, 4294901760
    %v235 = vsub.f32 %v36, %v234
    %v236 = vand.u32 %v235, 4294901760
    %v237 = vsub.f32 %v235, %v236
    %v238 = vand.u32 %v237, 4294901760
    %239 = vmatpush1.msra.mxu0 %v238
    %240 = vmatprep.subr.mxu0 0.0
    %241 = vmatpush1.msra.mxu0 0.0
    %242 = vmatprep.subr.mxu0 0.0
    %243 = vmatpush1.msra.mxu0 0.0
    %244 = vmatprep.subr.mxu0 0.0
    %245 = vmatpush1.msra.mxu0 0.0
    %246 = vmatprep.subr.mxu0 0.0
    %247 = vmatpush1.msra.mxu0 0.0
    %248 = vmatprep.subr.mxu0 0.0
    %249 = vmatpush1.msra.mxu0 0.0
    %250 = vmatprep.subr.mxu0 0.0
    %251 = vmatpush1.msra.mxu0 0.0
    %252 = vmatprep.subr.mxu0 0.0
    %253 = vmatpush1.msra.mxu0 0.0
    %254 = vmatprep.subr.mxu0 0.0
    %255 = vmatpush1.msra.mxu0 0.0
    %256 = vmatprep.subr.mxu0 0.0
    %257 = vmatpush1.msra.mxu0 0.0
    %258 = vmatprep.subr.mxu0 0.0
    %259 = vmatpush1.msra.mxu0 0.0
    %260 = vmatprep.subr.mxu0 0.0
    %261 = vmatpush1.msra.mxu0 0.0
    %262 = vmatprep.subr.mxu0 0.0
    %263 = vmatpush1.msra.mxu0 0.0
    %264 = vmatprep.subr.mxu0 0.0
    %265 = vmatpush1.msra.mxu0 0.0
    %266 = vmatprep.subr.mxu0 0.0
    %267 = vmatpush1.msra.mxu0 0.0
    %268 = vmatprep.subr.mxu0 0.0
    %269 = vmatpush1.msra.mxu0 0.0
    %270 = vmatprep.subr.mxu0 0.0
    %271 = vmatpush1.msra.mxu0 0.0
    %272 = vmatprep.mubr.f32.mxu0 0.0
    %v273 = vand.u32 %v20, 4294901760
    %274 = vmatmul.mubr.f32.gmra.mrb[0].mxu0 %v273
    %v275 = vpop.f32.mrb[0].mxu0
    %v276 = vadd.f32 %v125, %v275
    %v277 = vpop.f32.mrb[0].mxu0
    %278 = vdwg.mxu0
    %279 = vmatprep.subr.mxu0 0.0
    %v280 = vand.u32 %v21, 4294901760
    %v281 = vsub.f32 %v21, %v280
    %282 = vmatpush1.msra.mxu0 %v281
    %283 = vmatprep.subr.mxu0 0.0
    %v284 = vand.u32 %v22, 4294901760
    %v285 = vsub.f32 %v22, %v284
    %286 = vmatpush1.msra.mxu0 %v285
    %287 = vmatprep.subr.mxu0 0.0
    %v288 = vand.u32 %v23, 4294901760
    %v289 = vsub.f32 %v23, %v288
    %290 = vmatpush1.msra.mxu0 %v289
    %291 = vmatprep.subr.mxu0 0.0
    %v292 = vand.u32 %v24, 4294901760
    %v293 = vsub.f32 %v24, %v292
    %294 = vmatpush1.msra.mxu0 %v293
    %295 = vmatprep.subr.mxu0 0.0
    %v296 = vand.u32 %v25, 4294901760
    %v297 = vsub.f32 %v25, %v296
    %298 = vmatpush1.msra.mxu0 %v297
    %299 = vmatprep.subr.mxu0 0.0
    %v300 = vand.u32 %v26, 4294901760
    %v301 = vsub.f32 %v26, %v300
    %302 = vmatpush1.msra.mxu0 %v301
    %303 = vmatprep.subr.mxu0 0.0
    %v304 = vand.u32 %v27, 4294901760
    %v305 = vsub.f32 %v27, %v304
    %306 = vmatpush1.msra.mxu0 %v305
    %307 = vmatprep.subr.mxu0 0.0
    %v308 = vand.u32 %v28, 4294901760
    %v309 = vsub.f32 %v28, %v308
    %310 = vmatpush1.msra.mxu0 %v309
    %311 = vmatprep.subr.mxu0 0.0
    %v312 = vand.u32 %v29, 4294901760
    %v313 = vsub.f32 %v29, %v312
    %314 = vmatpush1.msra.mxu0 %v313
    %315 = vmatprep.subr.mxu0 0.0
    %v316 = vand.u32 %v30, 4294901760
    %v317 = vsub.f32 %v30, %v316
    %318 = vmatpush1.msra.mxu0 %v317
    %319 = vmatprep.subr.mxu0 0.0
    %v320 = vand.u32 %v31, 4294901760
    %v321 = vsub.f32 %v31, %v320
    %322 = vmatpush1.msra.mxu0 %v321
    %323 = vmatprep.subr.mxu0 0.0
    %v324 = vand.u32 %v32, 4294901760
    %v325 = vsub.f32 %v32, %v324
    %326 = vmatpush1.msra.mxu0 %v325
    %327 = vmatprep.subr.mxu0 0.0
    %v328 = vand.u32 %v33, 4294901760
    %v329 = vsub.f32 %v33, %v328
    %330 = vmatpush1.msra.mxu0 %v329
    %331 = vmatprep.subr.mxu0 0.0
    %v332 = vand.u32 %v34, 4294901760
    %v333 = vsub.f32 %v34, %v332
    %334 = vmatpush1.msra.mxu0 %v333
    %335 = vmatprep.subr.mxu0 0.0
    %v336 = vand.u32 %v35, 4294901760
    %v337 = vsub.f32 %v35, %v336
    %338 = vmatpush1.msra.mxu0 %v337
    %339 = vmatprep.subr.mxu0 0.0
    %v340 = vand.u32 %v36, 4294901760
    %v341 = vsub.f32 %v36, %v340
    %342 = vmatpush1.msra.mxu0 %v341
    %343 = vmatprep.subr.mxu0 0.0
    %344 = vmatpush1.msra.mxu0 0.0
    %345 = vmatprep.subr.mxu0 0.0
    %346 = vmatpush1.msra.mxu0 0.0
    %347 = vmatprep.subr.mxu0 0.0
    %348 = vmatpush1.msra.mxu0 0.0
    %349 = vmatprep.subr.mxu0 0.0
    %350 = vmatpush1.msra.mxu0 0.0
    %351 = vmatprep.subr.mxu0 0.0
    %352 = vmatpush1.msra.mxu0 0.0
    %353 = vmatprep.subr.mxu0 0.0
    %354 = vmatpush1.msra.mxu0 0.0
    %355 = vmatprep.subr.mxu0 0.0
    %356 = vmatpush1.msra.mxu0 0.0
    %357 = vmatprep.subr.mxu0 0.0
    %358 = vmatpush1.msra.mxu0 0.0
    %359 = vmatprep.subr.mxu0 0.0
    %360 = vmatpush1.msra.mxu0 0.0
    %361 = vmatprep.subr.mxu0 0.0
    %362 = vmatpush1.msra.mxu0 0.0
    %363 = vmatprep.subr.mxu0 0.0
    %364 = vmatpush1.msra.mxu0 0.0
    %365 = vmatprep.subr.mxu0 0.0
    %366 = vmatpush1.msra.mxu0 0.0
    %367 = vmatprep.subr.mxu0 0.0
    %368 = vmatpush1.msra.mxu0 0.0
    %369 = vmatprep.subr.mxu0 0.0
    %370 = vmatpush1.msra.mxu0 0.0
    %371 = vmatprep.subr.mxu0 0.0
    %372 = vmatpush1.msra.mxu0 0.0
    %373 = vmatprep.subr.mxu0 0.0
    %374 = vmatpush1.msra.mxu0 0.0
    %375 = vmatprep.mubr.f32.mxu0 0.0
    %v376 = vand.u32 %v20, 4294901760
    %v377 = vsub.f32 %v20, %v376
    %378 = vmatmul.mubr.f32.gmra.mrb[0].mxu0 %v377
    %v379 = vpop.f32.mrb[0].mxu0
    %v380 = vadd.f32 %v276, %v379
    %v381 = vpop.f32.mrb[0].mxu0
    %382 = vdwg.mxu0
    %383 = vmatprep.subr.mxu0 0.0
    %v384 = vand.u32 %v21, 4294901760
    %385 = vmatpush1.msra.mxu0 %v384
    %386 = vmatprep.subr.mxu0 0.0
    %v387 = vand.u32 %v22, 4294901760
    %388 = vmatpush1.msra.mxu0 %v387
    %389 = vmatprep.subr.mxu0 0.0
    %v390 = vand.u32 %v23, 4294901760
    %391 = vmatpush1.msra.mxu0 %v390
    %392 = vmatprep.subr.mxu0 0.0
    %v393 = vand.u32 %v24, 4294901760
    %394 = vmatpush1.msra.mxu0 %v393
    %395 = vmatprep.subr.mxu0 0.0
    %v396 = vand.u32 %v25, 4294901760
    %397 = vmatpush1.msra.mxu0 %v396
    %398 = vmatprep.subr.mxu0 0.0
    %v399 = vand.u32 %v26, 4294901760
    %400 = vmatpush1.msra.mxu0 %v399
    %401 = vmatprep.subr.mxu0 0.0
    %v402 = vand.u32 %v27, 4294901760
    %403 = vmatpush1.msra.mxu0 %v402
    %404 = vmatprep.subr.mxu0 0.0
    %v405 = vand.u32 %v28, 4294901760
    %406 = vmatpush1.msra.mxu0 %v405
    %407 = vmatprep.subr.mxu0 0.0
    %v408 = vand.u32 %v29, 4294901760
    %409 = vmatpush1.msra.mxu0 %v408
    %410 = vmatprep.subr.mxu0 0.0
    %v411 = vand.u32 %v30, 4294901760
    %412 = vmatpush1.msra.mxu0 %v411
    %413 = vmatprep.subr.mxu0 0.0
    %v414 = vand.u32 %v31, 4294901760
    %415 = vmatpush1.msra.mxu0 %v414
    %416 = vmatprep.subr.mxu0 0.0
    %v417 = vand.u32 %v32, 4294901760
    %418 = vmatpush1.msra.mxu0 %v417
    %419 = vmatprep.subr.mxu0 0.0
    %v420 = vand.u32 %v33, 4294901760
    %421 = vmatpush1.msra.mxu0 %v420
    %422 = vmatprep.subr.mxu0 0.0
    %v423 = vand.u32 %v34, 4294901760
    %424 = vmatpush1.msra.mxu0 %v423
    %425 = vmatprep.subr.mxu0 0.0
    %v426 = vand.u32 %v35, 4294901760
    %427 = vmatpush1.msra.mxu0 %v426
    %428 = vmatprep.subr.mxu0 0.0
    %v429 = vand.u32 %v36, 4294901760
    %430 = vmatpush1.msra.mxu0 %v429
    %431 = vmatprep.subr.mxu0 0.0
    %432 = vmatpush1.msra.mxu0 0.0
    %433 = vmatprep.subr.mxu0 0.0
    %434 = vmatpush1.msra.mxu0 0.0
    %435 = vmatprep.subr.mxu0 0.0
    %436 = vmatpush1.msra.mxu0 0.0
    %437 = vmatprep.subr.mxu0 0.0
    %438 = vmatpush1.msra.mxu0 0.0
    %439 = vmatprep.subr.mxu0 0.0
    %440 = vmatpush1.msra.mxu0 0.0
    %441 = vmatprep.subr.mxu0 0.0
    %442 = vmatpush1.msra.mxu0 0.0
    %443 = vmatprep.subr.mxu0 0.0
    %444 = vmatpush1.msra.mxu0 0.0
    %445 = vmatprep.subr.mxu0 0.0
    %446 = vmatpush1.msra.mxu0 0.0
    %447 = vmatprep.subr.mxu0 0.0
    %448 = vmatpush1.msra.mxu0 0.0
    %449 = vmatprep.subr.mxu0 0.0
    %450 = vmatpush1.msra.mxu0 0.0
    %451 = vmatprep.subr.mxu0 0.0
    %452 = vmatpush1.msra.mxu0 0.0
    %453 = vmatprep.subr.mxu0 0.0
    %454 = vmatpush1.msra.mxu0 0.0
    %455 = vmatprep.subr.mxu0 0.0
    %456 = vmatpush1.msra.mxu0 0.0
    %457 = vmatprep.subr.mxu0 0.0
    %458 = vmatpush1.msra.mxu0 0.0
    %459 = vmatprep.subr.mxu0 0.0
    %460 = vmatpush1.msra.mxu0 0.0
    %461 = vmatprep.subr.mxu0 0.0
    %462 = vmatpush1.msra.mxu0 0.0
    %463 = vmatprep.mubr.f32.mxu0 0.0
    %v464 = vand.u32 %v20, 4294901760
    %v465 = vsub.f32 %v20, %v464
    %v466 = vand.u32 %v465, 4294901760
    %467 = vmatmul.mubr.f32.gmra.mrb[0].mxu0 %v466
    %v468 = vpop.f32.mrb[0].mxu0
    %v469 = vadd.f32 %v380, %v468
    %v470 = vpop.f32.mrb[0].mxu0
    %471 = vdwg.mxu0
    %472 = vmatprep.subr.mxu0 0.0
    %v473 = vand.u32 %v21, 4294901760
    %v474 = vsub.f32 %v21, %v473
    %v475 = vand.u32 %v474, 4294901760
    %476 = vmatpush1.msra.mxu0 %v475
    %477 = vmatprep.subr.mxu0 0.0
    %v478 = vand.u32 %v22, 4294901760
    %v479 = vsub.f32 %v22, %v478
    %v480 = vand.u32 %v479, 4294901760
    %481 = vmatpush1.msra.mxu0 %v480
    %482 = vmatprep.subr.mxu0 0.0
    %v483 = vand.u32 %v23, 4294901760
    %v484 = vsub.f32 %v23, %v483
    %v485 = vand.u32 %v484, 4294901760
    %486 = vmatpush1.msra.mxu0 %v485
    %487 = vmatprep.subr.mxu0 0.0
    %v488 = vand.u32 %v24, 4294901760
    %v489 = vsub.f32 %v24, %v488
    %v490 = vand.u32 %v489, 4294901760
    %491 = vmatpush1.msra.mxu0 %v490
    %492 = vmatprep.subr.mxu0 0.0
    %v493 = vand.u32 %v25, 4294901760
    %v494 = vsub.f32 %v25, %v493
    %v495 = vand.u32 %v494, 4294901760
    %496 = vmatpush1.msra.mxu0 %v495
    %497 = vmatprep.subr.mxu0 0.0
    %v498 = vand.u32 %v26, 4294901760
    %v499 = vsub.f32 %v26, %v498
    %v500 = vand.u32 %v499, 4294901760
    %501 = vmatpush1.msra.mxu0 %v500
    %502 = vmatprep.subr.mxu0 0.0
    %v503 = vand.u32 %v27, 4294901760
    %v504 = vsub.f32 %v27, %v503
    %v505 = vand.u32 %v504, 4294901760
    %506 = vmatpush1.msra.mxu0 %v505
    %507 = vmatprep.subr.mxu0 0.0
    %v508 = vand.u32 %v28, 4294901760
    %v509 = vsub.f32 %v28, %v508
    %v510 = vand.u32 %v509, 4294901760
    %511 = vmatpush1.msra.mxu0 %v510
    %512 = vmatprep.subr.mxu0 0.0
    %v513 = vand.u32 %v29, 4294901760
    %v514 = vsub.f32 %v29, %v513
    %v515 = vand.u32 %v514, 4294901760
    %516 = vmatpush1.msra.mxu0 %v515
    %517 = vmatprep.subr.mxu0 0.0
    %v518 = vand.u32 %v30, 4294901760
    %v519 = vsub.f32 %v30, %v518
    %v520 = vand.u32 %v519, 4294901760
    %521 = vmatpush1.msra.mxu0 %v520
    %522 = vmatprep.subr.mxu0 0.0
    %v523 = vand.u32 %v31, 4294901760
    %v524 = vsub.f32 %v31, %v523
    %v525 = vand.u32 %v524, 4294901760
    %526 = vmatpush1.msra.mxu0 %v525
    %527 = vmatprep.subr.mxu0 0.0
    %v528 = vand.u32 %v32, 4294901760
    %v529 = vsub.f32 %v32, %v528
    %v530 = vand.u32 %v529, 4294901760
    %531 = vmatpush1.msra.mxu0 %v530
    %532 = vmatprep.subr.mxu0 0.0
    %v533 = vand.u32 %v33, 4294901760
    %v534 = vsub.f32 %v33, %v533
    %v535 = vand.u32 %v534, 4294901760
    %536 = vmatpush1.msra.mxu0 %v535
    %537 = vmatprep.subr.mxu0 0.0
    %v538 = vand.u32 %v34, 4294901760
    %v539 = vsub.f32 %v34, %v538
    %v540 = vand.u32 %v539, 4294901760
    %541 = vmatpush1.msra.mxu0 %v540
    %542 = vmatprep.subr.mxu0 0.0
    %v543 = vand.u32 %v35, 4294901760
    %v544 = vsub.f32 %v35, %v543
    %v545 = vand.u32 %v544, 4294901760
    %546 = vmatpush1.msra.mxu0 %v545
    %547 = vmatprep.subr.mxu0 0.0
    %v548 = vand.u32 %v36, 4294901760
    %v549 = vsub.f32 %v36, %v548
    %v550 = vand.u32 %v549, 4294901760
    %551 = vmatpush1.msra.mxu0 %v550
    %552 = vmatprep.subr.mxu0 0.0
    %553 = vmatpush1.msra.mxu0 0.0
    %554 = vmatprep.subr.mxu0 0.0
    %555 = vmatpush1.msra.mxu0 0.0
    %556 = vmatprep.subr.mxu0 0.0
    %557 = vmatpush1.msra.mxu0 0.0
    %558 = vmatprep.subr.mxu0 0.0
    %559 = vmatpush1.msra.mxu0 0.0
    %560 = vmatprep.subr.mxu0 0.0
    %561 = vmatpush1.msra.mxu0 0.0
    %562 = vmatprep.subr.mxu0 0.0
    %563 = vmatpush1.msra.mxu0 0.0
    %564 = vmatprep.subr.mxu0 0.0
    %565 = vmatpush1.msra.mxu0 0.0
    %566 = vmatprep.subr.mxu0 0.0
    %567 = vmatpush1.msra.mxu0 0.0
    %568 = vmatprep.subr.mxu0 0.0
    %569 = vmatpush1.msra.mxu0 0.0
    %570 = vmatprep.subr.mxu0 0.0
    %571 = vmatpush1.msra.mxu0 0.0
    %572 = vmatprep.subr.mxu0 0.0
    %573 = vmatpush1.msra.mxu0 0.0
    %574 = vmatprep.subr.mxu0 0.0
    %575 = vmatpush1.msra.mxu0 0.0
    %576 = vmatprep.subr.mxu0 0.0
    %577 = vmatpush1.msra.mxu0 0.0
    %578 = vmatprep.subr.mxu0 0.0
    %579 = vmatpush1.msra.mxu0 0.0
    %580 = vmatprep.subr.mxu0 0.0
    %581 = vmatpush1.msra.mxu0 0.0
    %582 = vmatprep.subr.mxu0 0.0
    %583 = vmatpush1.msra.mxu0 0.0
    %584 = vmatprep.mubr.f32.mxu0 0.0
    %v585 = vand.u32 %v20, 4294901760
    %586 = vmatmul.mubr.f32.gmra.mrb[0].mxu0 %v585
    %v587 = vpop.f32.mrb[0].mxu0
    %v588 = vadd.f32 %v469, %v587
    %v589 = vpop.f32.mrb[0].mxu0
    %590 = vdwg.mxu0
    %591 = vmatprep.subr.mxu0 0.0
    %v592 = vand.u32 %v21, 4294901760
    %593 = vmatpush1.msra.mxu0 %v592
    %594 = vmatprep.subr.mxu0 0.0
    %v595 = vand.u32 %v22, 4294901760
    %596 = vmatpush1.msra.mxu0 %v595
    %597 = vmatprep.subr.mxu0 0.0
    %v598 = vand.u32 %v23, 4294901760
    %599 = vmatpush1.msra.mxu0 %v598
    %600 = vmatprep.subr.mxu0 0.0
    %v601 = vand.u32 %v24, 4294901760
    %602 = vmatpush1.msra.mxu0 %v601
    %603 = vmatprep.subr.mxu0 0.0
    %v604 = vand.u32 %v25, 4294901760
    %605 = vmatpush1.msra.mxu0 %v604
    %606 = vmatprep.subr.mxu0 0.0
    %v607 = vand.u32 %v26, 4294901760
    %608 = vmatpush1.msra.mxu0 %v607
    %609 = vmatprep.subr.mxu0 0.0
    %v610 = vand.u32 %v27, 4294901760
    %611 = vmatpush1.msra.mxu0 %v610
    %612 = vmatprep.subr.mxu0 0.0
    %v613 = vand.u32 %v28, 4294901760
    %614 = vmatpush1.msra.mxu0 %v613
    %615 = vmatprep.subr.mxu0 0.0
    %v616 = vand.u32 %v29, 4294901760
    %617 = vmatpush1.msra.mxu0 %v616
    %618 = vmatprep.subr.mxu0 0.0
    %v619 = vand.u32 %v30, 4294901760
    %620 = vmatpush1.msra.mxu0 %v619
    %621 = vmatprep.subr.mxu0 0.0
    %v622 = vand.u32 %v31, 4294901760
    %623 = vmatpush1.msra.mxu0 %v622
    %624 = vmatprep.subr.mxu0 0.0
    %v625 = vand.u32 %v32, 4294901760
    %626 = vmatpush1.msra.mxu0 %v625
    %627 = vmatprep.subr.mxu0 0.0
    %v628 = vand.u32 %v33, 4294901760
    %629 = vmatpush1.msra.mxu0 %v628
    %630 = vmatprep.subr.mxu0 0.0
    %v631 = vand.u32 %v34, 4294901760
    %632 = vmatpush1.msra.mxu0 %v631
    %633 = vmatprep.subr.mxu0 0.0
    %v634 = vand.u32 %v35, 4294901760
    %635 = vmatpush1.msra.mxu0 %v634
    %636 = vmatprep.subr.mxu0 0.0
    %v637 = vand.u32 %v36, 4294901760
    %638 = vmatpush1.msra.mxu0 %v637
    %639 = vmatprep.subr.mxu0 0.0
    %640 = vmatpush1.msra.mxu0 0.0
    %641 = vmatprep.subr.mxu0 0.0
    %642 = vmatpush1.msra.mxu0 0.0
    %643 = vmatprep.subr.mxu0 0.0
    %644 = vmatpush1.msra.mxu0 0.0
    %645 = vmatprep.subr.mxu0 0.0
    %646 = vmatpush1.msra.mxu0 0.0
    %647 = vmatprep.subr.mxu0 0.0
    %648 = vmatpush1.msra.mxu0 0.0
    %649 = vmatprep.subr.mxu0 0.0
    %650 = vmatpush1.msra.mxu0 0.0
    %651 = vmatprep.subr.mxu0 0.0
    %652 = vmatpush1.msra.mxu0 0.0
    %653 = vmatprep.subr.mxu0 0.0
    %654 = vmatpush1.msra.mxu0 0.0
    %655 = vmatprep.subr.mxu0 0.0
    %656 = vmatpush1.msra.mxu0 0.0
    %657 = vmatprep.subr.mxu0 0.0
    %658 = vmatpush1.msra.mxu0 0.0
    %659 = vmatprep.subr.mxu0 0.0
    %660 = vmatpush1.msra.mxu0 0.0
    %661 = vmatprep.subr.mxu0 0.0
    %662 = vmatpush1.msra.mxu0 0.0
    %663 = vmatprep.subr.mxu0 0.0
    %664 = vmatpush1.msra.mxu0 0.0
    %665 = vmatprep.subr.mxu0 0.0
    %666 = vmatpush1.msra.mxu0 0.0
    %667 = vmatprep.subr.mxu0 0.0
    %668 = vmatpush1.msra.mxu0 0.0
    %669 = vmatprep.subr.mxu0 0.0
    %670 = vmatpush1.msra.mxu0 0.0
    %671 = vmatprep.mubr.f32.mxu0 0.0
    %v672 = vand.u32 %v20, 4294901760
    %673 = vmatmul.mubr.f32.gmra.mrb[0].mxu0 %v672
    %v674 = vpop.f32.mrb[0].mxu0
    %v675 = vadd.f32 %v588, %v674
    %v676 = vpop.f32.mrb[0].mxu0
    %677 = vdwg.mxu0
    %v678 = vmax.f32 %v675, 1e-10
    %v679 = vrsqrt.pop %v678
    %v680 = vld [vmem:[%s3] sm:$0xff]
    %vm681 = vcmask 64512
    %v683 = vsel %vm681, %v679, 0
    %685 = vmatprep.subr.mxu0 0.0
    %v686 = vand.u32 %v680, 4294901760
    %687 = vmatpush1.msra.mxu0 %v686
    %688 = vmatprep.subr.mxu0 0.0
    %689 = vmatpush1.msra.mxu0 0.0
    %690 = vmatprep.subr.mxu0 0.0
    %691 = vmatpush1.msra.mxu0 0.0
    %692 = vmatprep.subr.mxu0 0.0
    %693 = vmatpush1.msra.mxu0 0.0
    %694 = vmatprep.subr.mxu0 0.0
    %695 = vmatpush1.msra.mxu0 0.0
    %696 = vmatprep.subr.mxu0 0.0
    %697 = vmatpush1.msra.mxu0 0.0
    %698 = vmatprep.subr.mxu0 0.0
    %699 = vmatpush1.msra.mxu0 0.0
    %700 = vmatprep.subr.mxu0 0.0
    %701 = vmatpush1.msra.mxu0 0.0
    %702 = vmatprep.subr.mxu0 0.0
    %703 = vmatpush1.msra.mxu0 0.0
    %704 = vmatprep.subr.mxu0 0.0
    %705 = vmatpush1.msra.mxu0 0.0
    %706 = vmatprep.subr.mxu0 0.0
    %707 = vmatpush1.msra.mxu0 0.0
    %708 = vmatprep.subr.mxu0 0.0
    %709 = vmatpush1.msra.mxu0 0.0
    %710 = vmatprep.subr.mxu0 0.0
    %711 = vmatpush1.msra.mxu0 0.0
    %712 = vmatprep.subr.mxu0 0.0
    %713 = vmatpush1.msra.mxu0 0.0
    %714 = vmatprep.subr.mxu0 0.0
    %715 = vmatpush1.msra.mxu0 0.0
    %716 = vmatprep.subr.mxu0 0.0
    %717 = vmatpush1.msra.mxu0 0.0
    %718 = vmatprep.subr.mxu0 0.0
    %719 = vmatpush1.msra.mxu0 0.0
    %720 = vmatprep.subr.mxu0 0.0
    %721 = vmatpush1.msra.mxu0 0.0
    %722 = vmatprep.subr.mxu0 0.0
    %723 = vmatpush1.msra.mxu0 0.0
    %724 = vmatprep.subr.mxu0 0.0
    %725 = vmatpush1.msra.mxu0 0.0
    %726 = vmatprep.subr.mxu0 0.0
    %727 = vmatpush1.msra.mxu0 0.0
    %728 = vmatprep.subr.mxu0 0.0
    %729 = vmatpush1.msra.mxu0 0.0
    %730 = vmatprep.subr.mxu0 0.0
    %731 = vmatpush1.msra.mxu0 0.0
    %732 = vmatprep.subr.mxu0 0.0
    %733 = vmatpush1.msra.mxu0 0.0
    %734 = vmatprep.subr.mxu0 0.0
    %735 = vmatpush1.msra.mxu0 0.0
    %736 = vmatprep.subr.mxu0 0.0
    %737 = vmatpush1.msra.mxu0 0.0
    %738 = vmatprep.subr.mxu0 0.0
    %739 = vmatpush1.msra.mxu0 0.0
    %740 = vmatprep.subr.mxu0 0.0
    %741 = vmatpush1.msra.mxu0 0.0
    %742 = vmatprep.subr.mxu0 0.0
    %743 = vmatpush1.msra.mxu0 0.0
    %744 = vmatprep.subr.mxu0 0.0
    %745 = vmatpush1.msra.mxu0 0.0
    %746 = vmatprep.subr.mxu0 0.0
    %747 = vmatpush1.msra.mxu0 0.0
    %748 = vmatprep.subr.mxu0 0.0
    %749 = vmatpush1.msra.mxu0 0.0
    %750 = vmatprep.mubr.f32.mxu0 0.0
    %v751 = vand.u32 %v683, 4294901760
    %v752 = vsub.f32 %v683, %v751
    %v753 = vand.u32 %v752, 4294901760
    %v754 = vsub.f32 %v752, %v753
    %v755 = vand.u32 %v754, 4294901760
    %756 = vmatmul.mubr.f32.gmra.mrb[0].mxu0 %v755
    %v757 = vpop.f32.mrb[0].mxu0
    %v758 = vadd.f32 0.0, %v757
    %v759 = vpop.f32.mrb[0].mxu0
    %760 = vdwg.mxu0
    %761 = vmatprep.subr.mxu0 0.0
    %v762 = vand.u32 %v680, 4294901760
    %v763 = vsub.f32 %v680, %v762
    %v764 = vand.u32 %v763, 4294901760
    %v765 = vsub.f32 %v763, %v764
    %v766 = vand.u32 %v765, 4294901760
    %767 = vmatpush1.msra.mxu0 %v766
    %768 = vmatprep.subr.mxu0 0.0
    %769 = vmatpush1.msra.mxu0 0.0
    %770 = vmatprep.subr.mxu0 0.0
    %771 = vmatpush1.msra.mxu0 0.0
    %772 = vmatprep.subr.mxu0 0.0
    %773 = vmatpush1.msra.mxu0 0.0
    %774 = vmatprep.subr.mxu0 0.0
    %775 = vmatpush1.msra.mxu0 0.0
    %776 = vmatprep.subr.mxu0 0.0
    %777 = vmatpush1.msra.mxu0 0.0
    %778 = vmatprep.subr.mxu0 0.0
    %779 = vmatpush1.msra.mxu0 0.0
    %780 = vmatprep.subr.mxu0 0.0
    %781 = vmatpush1.msra.mxu0 0.0
    %782 = vmatprep.subr.mxu0 0.0
    %783 = vmatpush1.msra.mxu0 0.0
    %784 = vmatprep.subr.mxu0 0.0
    %785 = vmatpush1.msra.mxu0 0.0
    %786 = vmatprep.subr.mxu0 0.0
    %787 = vmatpush1.msra.mxu0 0.0
    %788 = vmatprep.subr.mxu0 0.0
    %789 = vmatpush1.msra.mxu0 0.0
    %790 = vmatprep.subr.mxu0 0.0
    %791 = vmatpush1.msra.mxu0 0.0
    %792 = vmatprep.subr.mxu0 0.0
    %793 = vmatpush1.msra.mxu0 0.0
    %794 = vmatprep.subr.mxu0 0.0
    %795 = vmatpush1.msra.mxu0 0.0
    %796 = vmatprep.subr.mxu0 0.0
    %797 = vmatpush1.msra.mxu0 0.0
    %798 = vmatprep.subr.mxu0 0.0
    %799 = vmatpush1.msra.mxu0 0.0
    %800 = vmatprep.subr.mxu0 0.0
    %801 = vmatpush1.msra.mxu0 0.0
    %802 = vmatprep.subr.mxu0 0.0
    %803 = vmatpush1.msra.mxu0 0.0
    %804 = vmatprep.subr.mxu0 0.0
    %805 = vmatpush1.msra.mxu0 0.0
    %806 = vmatprep.subr.mxu0 0.0
    %807 = vmatpush1.msra.mxu0 0.0
    %808 = vmatprep.subr.mxu0 0.0
    %809 = vmatpush1.msra.mxu0 0.0
    %810 = vmatprep.subr.mxu0 0.0
    %811 = vmatpush1.msra.mxu0 0.0
    %812 = vmatprep.subr.mxu0 0.0
    %813 = vmatpush1.msra.mxu0 0.0
    %814 = vmatprep.subr.mxu0 0.0
    %815 = vmatpush1.msra.mxu0 0.0
    %816 = vmatprep.subr.mxu0 0.0
    %817 = vmatpush1.msra.mxu0 0.0
    %818 = vmatprep.subr.mxu0 0.0
    %819 = vmatpush1.msra.mxu0 0.0
    %820 = vmatprep.subr.mxu0 0.0
    %821 = vmatpush1.msra.mxu0 0.0
    %822 = vmatprep.subr.mxu0 0.0
    %823 = vmatpush1.msra.mxu0 0.0
    %824 = vmatprep.subr.mxu0 0.0
    %825 = vmatpush1.msra.mxu0 0.0
    %826 = vmatprep.subr.mxu0 0.0
    %827 = vmatpush1.msra.mxu0 0.0
    %828 = vmatprep.subr.mxu0 0.0
    %829 = vmatpush1.msra.mxu0 0.0
    %830 = vmatprep.mubr.f32.mxu0 0.0
    %v831 = vand.u32 %v683, 4294901760
    %832 = vmatmul.mubr.f32.gmra.mrb[0].mxu0 %v831
    %v833 = vpop.f32.mrb[0].mxu0
    %v834 = vadd.f32 %v758, %v833
    %v835 = vpop.f32.mrb[0].mxu0
    %836 = vdwg.mxu0
    %837 = vmatprep.subr.mxu0 0.0
    %v838 = vand.u32 %v680, 4294901760
    %v839 = vsub.f32 %v680, %v838
    %840 = vmatpush1.msra.mxu0 %v839
    %841 = vmatprep.subr.mxu0 0.0
    %842 = vmatpush1.msra.mxu0 0.0
    %843 = vmatprep.subr.mxu0 0.0
    %844 = vmatpush1.msra.mxu0 0.0
    %845 = vmatprep.subr.mxu0 0.0
    %846 = vmatpush1.msra.mxu0 0.0
    %847 = vmatprep.subr.mxu0 0.0
    %848 = vmatpush1.msra.mxu0 0.0
    %849 = vmatprep.subr.mxu0 0.0
    %850 = vmatpush1.msra.mxu0 0.0
    %851 = vmatprep.subr.mxu0 0.0
    %852 = vmatpush1.msra.mxu0 0.0
    %853 = vmatprep.subr.mxu0 0.0
    %854 = vmatpush1.msra.mxu0 0.0
    %855 = vmatprep.subr.mxu0 0.0
    %856 = vmatpush1.msra.mxu0 0.0
    %857 = vmatprep.subr.mxu0 0.0
    %858 = vmatpush1.msra.mxu0 0.0
    %859 = vmatprep.subr.mxu0 0.0
    %860 = vmatpush1.msra.mxu0 0.0
    %861 = vmatprep.subr.mxu0 0.0
    %862 = vmatpush1.msra.mxu0 0.0
    %863 = vmatprep.subr.mxu0 0.0
    %864 = vmatpush1.msra.mxu0 0.0
    %865 = vmatprep.subr.mxu0 0.0
    %866 = vmatpush1.msra.mxu0 0.0
    %867 = vmatprep.subr.mxu0 0.0
    %868 = vmatpush1.msra.mxu0 0.0
    %869 = vmatprep.subr.mxu0 0.0
    %870 = vmatpush1.msra.mxu0 0.0
    %871 = vmatprep.subr.mxu0 0.0
    %872 = vmatpush1.msra.mxu0 0.0
    %873 = vmatprep.subr.mxu0 0.0
    %874 = vmatpush1.msra.mxu0 0.0
    %875 = vmatprep.subr.mxu0 0.0
    %876 = vmatpush1.msra.mxu0 0.0
    %877 = vmatprep.subr.mxu0 0.0
    %878 = vmatpush1.msra.mxu0 0.0
    %879 = vmatprep.subr.mxu0 0.0
    %880 = vmatpush1.msra.mxu0 0.0
    %881 = vmatprep.subr.mxu0 0.0
    %882 = vmatpush1.msra.mxu0 0.0
    %883 = vmatprep.subr.mxu0 0.0
    %884 = vmatpush1.msra.mxu0 0.0
    %885 = vmatprep.subr.mxu0 0.0
    %886 = vmatpush1.msra.mxu0 0.0
    %887 = vmatprep.subr.mxu0 0.0
    %888 = vmatpush1.msra.mxu0 0.0
    %889 = vmatprep.subr.mxu0 0.0
    %890 = vmatpush1.msra.mxu0 0.0
    %891 = vmatprep.subr.mxu0 0.0
    %892 = vmatpush1.msra.mxu0 0.0
    %893 = vmatprep.subr.mxu0 0.0
    %894 = vmatpush1.msra.mxu0 0.0
    %895 = vmatprep.subr.mxu0 0.0
    %896 = vmatpush1.msra.mxu0 0.0
    %897 = vmatprep.subr.mxu0 0.0
    %898 = vmatpush1.msra.mxu0 0.0
    %899 = vmatprep.subr.mxu0 0.0
    %900 = vmatpush1.msra.mxu0 0.0
    %901 = vmatprep.subr.mxu0 0.0
    %902 = vmatpush1.msra.mxu0 0.0
    %903 = vmatprep.mubr.f32.mxu0 0.0
    %v904 = vand.u32 %v683, 4294901760
    %v905 = vsub.f32 %v683, %v904
    %906 = vmatmul.mubr.f32.gmra.mrb[0].mxu0 %v905
    %v907 = vpop.f32.mrb[0].mxu0
    %v908 = vadd.f32 %v834, %v907
    %v909 = vpop.f32.mrb[0].mxu0
    %910 = vdwg.mxu0
    %911 = vmatprep.subr.mxu0 0.0
    %v912 = vand.u32 %v680, 4294901760
    %913 = vmatpush1.msra.mxu0 %v912
    %914 = vmatprep.subr.mxu0 0.0
    %915 = vmatpush1.msra.mxu0 0.0
    %916 = vmatprep.subr.mxu0 0.0
    %917 = vmatpush1.msra.mxu0 0.0
    %918 = vmatprep.subr.mxu0 0.0
    %919 = vmatpush1.msra.mxu0 0.0
    %920 = vmatprep.subr.mxu0 0.0
    %921 = vmatpush1.msra.mxu0 0.0
    %922 = vmatprep.subr.mxu0 0.0
    %923 = vmatpush1.msra.mxu0 0.0
    %924 = vmatprep.subr.mxu0 0.0
    %925 = vmatpush1.msra.mxu0 0.0
    %926 = vmatprep.subr.mxu0 0.0
    %927 = vmatpush1.msra.mxu0 0.0
    %928 = vmatprep.subr.mxu0 0.0
    %929 = vmatpush1.msra.mxu0 0.0
    %930 = vmatprep.subr.mxu0 0.0
    %931 = vmatpush1.msra.mxu0 0.0
    %932 = vmatprep.subr.mxu0 0.0
    %933 = vmatpush1.msra.mxu0 0.0
    %934 = vmatprep.subr.mxu0 0.0
    %935 = vmatpush1.msra.mxu0 0.0
    %936 = vmatprep.subr.mxu0 0.0
    %937 = vmatpush1.msra.mxu0 0.0
    %938 = vmatprep.subr.mxu0 0.0
    %939 = vmatpush1.msra.mxu0 0.0
    %940 = vmatprep.subr.mxu0 0.0
    %941 = vmatpush1.msra.mxu0 0.0
    %942 = vmatprep.subr.mxu0 0.0
    %943 = vmatpush1.msra.mxu0 0.0
    %944 = vmatprep.subr.mxu0 0.0
    %945 = vmatpush1.msra.mxu0 0.0
    %946 = vmatprep.subr.mxu0 0.0
    %947 = vmatpush1.msra.mxu0 0.0
    %948 = vmatprep.subr.mxu0 0.0
    %949 = vmatpush1.msra.mxu0 0.0
    %950 = vmatprep.subr.mxu0 0.0
    %951 = vmatpush1.msra.mxu0 0.0
    %952 = vmatprep.subr.mxu0 0.0
    %953 = vmatpush1.msra.mxu0 0.0
    %954 = vmatprep.subr.mxu0 0.0
    %955 = vmatpush1.msra.mxu0 0.0
    %956 = vmatprep.subr.mxu0 0.0
    %957 = vmatpush1.msra.mxu0 0.0
    %958 = vmatprep.subr.mxu0 0.0
    %959 = vmatpush1.msra.mxu0 0.0
    %960 = vmatprep.subr.mxu0 0.0
    %961 = vmatpush1.msra.mxu0 0.0
    %962 = vmatprep.subr.mxu0 0.0
    %963 = vmatpush1.msra.mxu0 0.0
    %964 = vmatprep.subr.mxu0 0.0
    %965 = vmatpush1.msra.mxu0 0.0
    %966 = vmatprep.subr.mxu0 0.0
    %967 = vmatpush1.msra.mxu0 0.0
    %968 = vmatprep.subr.mxu0 0.0
    %969 = vmatpush1.msra.mxu0 0.0
    %970 = vmatprep.subr.mxu0 0.0
    %971 = vmatpush1.msra.mxu0 0.0
    %972 = vmatprep.subr.mxu0 0.0
    %973 = vmatpush1.msra.mxu0 0.0
    %974 = vmatprep.subr.mxu0 0.0
    %975 = vmatpush1.msra.mxu0 0.0
    %976 = vmatprep.mubr.f32.mxu0 0.0
    %v977 = vand.u32 %v683, 4294901760
    %v978 = vsub.f32 %v683, %v977
    %v979 = vand.u32 %v978, 4294901760
    %980 = vmatmul.mubr.f32.gmra.mrb[0].mxu0 %v979
    %v981 = vpop.f32.mrb[0].mxu0
    %v982 = vadd.f32 %v908, %v981
    %v983 = vpop.f32.mrb[0].mxu0
    %984 = vdwg.mxu0
    %985 = vmatprep.subr.mxu0 0.0
    %v986 = vand.u32 %v680, 4294901760
    %v987 = vsub.f32 %v680, %v986
    %v988 = vand.u32 %v987, 4294901760
    %989 = vmatpush1.msra.mxu0 %v988
    %990 = vmatprep.subr.mxu0 0.0
    %991 = vmatpush1.msra.mxu0 0.0
    %992 = vmatprep.subr.mxu0 0.0
    %993 = vmatpush1.msra.mxu0 0.0
    %994 = vmatprep.subr.mxu0 0.0
    %995 = vmatpush1.msra.mxu0 0.0
    %996 = vmatprep.subr.mxu0 0.0
    %997 = vmatpush1.msra.mxu0 0.0
    %998 = vmatprep.subr.mxu0 0.0
    %999 = vmatpush1.msra.mxu0 0.0
    %1000 = vmatprep.subr.mxu0 0.0
    %1001 = vmatpush1.msra.mxu0 0.0
    %1002 = vmatprep.subr.mxu0 0.0
    %1003 = vmatpush1.msra.mxu0 0.0
    %1004 = vmatprep.subr.mxu0 0.0
    %1005 = vmatpush1.msra.mxu0 0.0
    %1006 = vmatprep.subr.mxu0 0.0
    %1007 = vmatpush1.msra.mxu0 0.0
    %1008 = vmatprep.subr.mxu0 0.0
    %1009 = vmatpush1.msra.mxu0 0.0
    %1010 = vmatprep.subr.mxu0 0.0
    %1011 = vmatpush1.msra.mxu0 0.0
    %1012 = vmatprep.subr.mxu0 0.0
    %1013 = vmatpush1.msra.mxu0 0.0
    %1014 = vmatprep.subr.mxu0 0.0
    %1015 = vmatpush1.msra.mxu0 0.0
    %1016 = vmatprep.subr.mxu0 0.0
    %1017 = vmatpush1.msra.mxu0 0.0
    %1018 = vmatprep.subr.mxu0 0.0
    %1019 = vmatpush1.msra.mxu0 0.0
    %1020 = vmatprep.subr.mxu0 0.0
    %1021 = vmatpush1.msra.mxu0 0.0
    %1022 = vmatprep.subr.mxu0 0.0
    %1023 = vmatpush1.msra.mxu0 0.0
    %1024 = vmatprep.subr.mxu0 0.0
    %1025 = vmatpush1.msra.mxu0 0.0
    %1026 = vmatprep.subr.mxu0 0.0
    %1027 = vmatpush1.msra.mxu0 0.0
    %1028 = vmatprep.subr.mxu0 0.0
    %1029 = vmatpush1.msra.mxu0 0.0
    %1030 = vmatprep.subr.mxu0 0.0
    %1031 = vmatpush1.msra.mxu0 0.0
    %1032 = vmatprep.subr.mxu0 0.0
    %1033 = vmatpush1.msra.mxu0 0.0
    %1034 = vmatprep.subr.mxu0 0.0
    %1035 = vmatpush1.msra.mxu0 0.0
    %1036 = vmatprep.subr.mxu0 0.0
    %1037 = vmatpush1.msra.mxu0 0.0
    %1038 = vmatprep.subr.mxu0 0.0
    %1039 = vmatpush1.msra.mxu0 0.0
    %1040 = vmatprep.subr.mxu0 0.0
    %1041 = vmatpush1.msra.mxu0 0.0
    %1042 = vmatprep.subr.mxu0 0.0
    %1043 = vmatpush1.msra.mxu0 0.0
    %1044 = vmatprep.subr.mxu0 0.0
    %1045 = vmatpush1.msra.mxu0 0.0
    %1046 = vmatprep.subr.mxu0 0.0
    %1047 = vmatpush1.msra.mxu0 0.0
    %1048 = vmatprep.subr.mxu0 0.0
    %1049 = vmatpush1.msra.mxu0 0.0
    %1050 = vmatprep.subr.mxu0 0.0
    %1051 = vmatpush1.msra.mxu0 0.0
    %1052 = vmatprep.mubr.f32.mxu0 0.0
    %v1053 = vand.u32 %v683, 4294901760
    %1054 = vmatmul.mubr.f32.gmra.mrb[0].mxu0 %v1053
    %v1055 = vpop.f32.mrb[0].mxu0
    %v1056 = vadd.f32 %v982, %v1055
    %v1057 = vpop.f32.mrb[0].mxu0
    %1058 = vdwg.mxu0
    %1059 = vmatprep.subr.mxu0 0.0
    %v1060 = vand.u32 %v680, 4294901760
    %1061 = vmatpush1.msra.mxu0 %v1060
    %1062 = vmatprep.subr.mxu0 0.0
    %1063 = vmatpush1.msra.mxu0 0.0
    %1064 = vmatprep.subr.mxu0 0.0
    %1065 = vmatpush1.msra.mxu0 0.0
    %1066 = vmatprep.subr.mxu0 0.0
    %1067 = vmatpush1.msra.mxu0 0.0
    %1068 = vmatprep.subr.mxu0 0.0
    %1069 = vmatpush1.msra.mxu0 0.0
    %1070 = vmatprep.subr.mxu0 0.0
    %1071 = vmatpush1.msra.mxu0 0.0
    %1072 = vmatprep.subr.mxu0 0.0
    %1073 = vmatpush1.msra.mxu0 0.0
    %1074 = vmatprep.subr.mxu0 0.0
    %1075 = vmatpush1.msra.mxu0 0.0
    %1076 = vmatprep.subr.mxu0 0.0
    %1077 = vmatpush1.msra.mxu0 0.0
    %1078 = vmatprep.subr.mxu0 0.0
    %1079 = vmatpush1.msra.mxu0 0.0
    %1080 = vmatprep.subr.mxu0 0.0
    %1081 = vmatpush1.msra.mxu0 0.0
    %1082 = vmatprep.subr.mxu0 0.0
    %1083 = vmatpush1.msra.mxu0 0.0
    %1084 = vmatprep.subr.mxu0 0.0
    %1085 = vmatpush1.msra.mxu0 0.0
    %1086 = vmatprep.subr.mxu0 0.0
    %1087 = vmatpush1.msra.mxu0 0.0
    %1088 = vmatprep.subr.mxu0 0.0
    %1089 = vmatpush1.msra.mxu0 0.0
    %1090 = vmatprep.subr.mxu0 0.0
    %1091 = vmatpush1.msra.mxu0 0.0
    %1092 = vmatprep.subr.mxu0 0.0
    %1093 = vmatpush1.msra.mxu0 0.0
    %1094 = vmatprep.subr.mxu0 0.0
    %1095 = vmatpush1.msra.mxu0 0.0
    %1096 = vmatprep.subr.mxu0 0.0
    %1097 = vmatpush1.msra.mxu0 0.0
    %1098 = vmatprep.subr.mxu0 0.0
    %1099 = vmatpush1.msra.mxu0 0.0
    %1100 = vmatprep.subr.mxu0 0.0
    %1101 = vmatpush1.msra.mxu0 0.0
    %1102 = vmatprep.subr.mxu0 0.0
    %1103 = vmatpush1.msra.mxu0 0.0
    %1104 = vmatprep.subr.mxu0 0.0
    %1105 = vmatpush1.msra.mxu0 0.0
    %1106 = vmatprep.subr.mxu0 0.0
    %1107 = vmatpush1.msra.mxu0 0.0
    %1108 = vmatprep.subr.mxu0 0.0
    %1109 = vmatpush1.msra.mxu0 0.0
    %1110 = vmatprep.subr.mxu0 0.0
    %1111 = vmatpush1.msra.mxu0 0.0
    %1112 = vmatprep.subr.mxu0 0.0
    %1113 = vmatpush1.msra.mxu0 0.0
    %1114 = vmatprep.subr.mxu0 0.0
    %1115 = vmatpush1.msra.mxu0 0.0
    %1116 = vmatprep.subr.mxu0 0.0
    %1117 = vmatpush1.msra.mxu0 0.0
    %1118 = vmatprep.subr.mxu0 0.0
    %1119 = vmatpush1.msra.mxu0 0.0
    %1120 = vmatprep.subr.mxu0 0.0
    %1121 = vmatpush1.msra.mxu0 0.0
    %1122 = vmatprep.subr.mxu0 0.0
    %1123 = vmatpush1.msra.mxu0 0.0
    %1124 = vmatprep.mubr.f32.mxu0 0.0
    %v1125 = vand.u32 %v683, 4294901760
    %1126 = vmatmul.mubr.f32.gmra.mrb[0].mxu0 %v1125
    %v1127 = vpop.f32.mrb[0].mxu0
    %v1128 = vadd.f32 %v1056, %v1127
    %v1129 = vpop.f32.mrb[0].mxu0
    %1130 = vdwg.mxu0
    %v1131 = vmul.f32 %v19, %v1128
    %s1132 = sld [smem:[#allocation2]]
    %v1133 = vstv %s1132
    %v1134 = vadd.f32 %v1131, %v1133
    %1135 = vst [vmem:[#allocation3] sm:$0xff] %v1134
    // Predicated region
    $region18: #{tpu_custom_call.1} parent=1 // pred_check
      _
    $region19: #{tpu_custom_call.1} parent=1 // pred_check_branch
      %1137 = sbr.rel (0) target = $region21
    $region20: #{tpu_custom_call.1} parent=1 // pred_region
      %s1139 = ssub.s32 128, 128
      %1140 = vsyncadd [#allocation4], %s1139
      %s1142 = sshll.u32 [#allocation3], 4
      %s1143 = int_to_ptr.vmem [resolvable:$true] %s1142
      %1145 = dma.vmem_to_hbm [thread:$0]  %s1143, 128, %s4, [#allocation4]
    $region21: #{tpu_custom_call.1} parent=1 // pred_fallthru
      _
    // Predicated region
    $region22: #{tpu_custom_call.1} parent=1 // pred_check
      _
    $region23: #{tpu_custom_call.1} parent=1 // pred_check_branch
      %1147 = sbr.rel (0) target = $region25
    $region24: #{tpu_custom_call.1} parent=1 // pred_region
      %1148 = dma.done [#allocation4], 128
    $region25: #{tpu_custom_call.1} parent=1 // pred_fallthru
      _
    %1149 = vsyncpa [#allocation4], 1

</llo_original>
